<compile_context>
chip_gen: v7x
topology: tpu7x:2x2x1
jax: 0.10.0
libtpu: 0.0.40
codegen_flags: <defaults>
</compile_context>

<pallas_src>
import jax
import jax.numpy as jnp
from jax.experimental import pallas as pl
from jax.experimental.pallas import tpu as pltpu


def _round_up(x: int, m: int) -> int:
    return ((x + m - 1) // m) * m


def _make_cln_kernel(eps: float):
    def cln_kernel(x_ref, inv_cnt_ref, gain_ref, bias_ref, o_ref, carry_ref):
        # x_ref:       (1, C, Tt)   current (batch, time-tile) block, native dtype
        # inv_cnt_ref: (1, Tt)      precomputed 1 / ((global_t + 1) * C), f32
        # gain_ref:    (C, 1)       per-channel gain (input dtype)
        # bias_ref:    (C, 1)       per-channel bias (input dtype)
        # carry_ref:   (2, 1) f32   running [cum_sum; cum_pow_sum] across T-tiles
        t_idx = pl.program_id(1)

        @pl.when(t_idx == 0)
        def _init():
            carry_ref[...] = jnp.zeros_like(carry_ref)

        x = x_ref[0]                                     # (C, Tt), native dtype
        C, Tt = x.shape
        xf = x.astype(jnp.float32)                       # f32 accumulation for stats

        # Per-time-step sums pooled over channels (cross-sublane reduce -> XLU).
        step_sum = jnp.sum(xf, axis=0, keepdims=True)        # (1, Tt) f32
        step_pow = jnp.sum(xf * xf, axis=0, keepdims=True)   # (1, Tt) f32

        # Inclusive prefix sum within the tile: Hillis–Steele log-step scan on
        # the stacked (2, Tt) row using pltpu.roll (XLU) + masked f32 adds.
        stacked = jnp.concatenate([step_sum, step_pow], axis=0)      # (2, Tt)
        lane = jax.lax.broadcasted_iota(jnp.int32, (2, Tt), 1)       # hoisted once
        d = 1
        while d < Tt:                                    # static: ceil(log2(Tt)) steps
            shifted = pltpu.roll(stacked, d, 1)          # rotate right by d along lanes
            stacked = stacked + jnp.where(lane >= d, shifted, 0.0)
            d *= 2

        # Add the carry from previous tiles, then update the carry.
        stacked = stacked + carry_ref[...]               # (2, 1) broadcast over lanes
        carry_ref[...] = stacked[:, Tt - 1:Tt]

        cum_sum = stacked[0:1, :]                        # (1, Tt)
        cum_pow = stacked[1:2, :]                        # (1, Tt)

        inv_cnt = inv_cnt_ref[...]                       # (1, Tt) f32
        cum_mean = cum_sum * inv_cnt
        cum_var = (cum_pow - 2.0 * cum_mean * cum_sum) * inv_cnt + cum_mean * cum_mean
        inv_std = jax.lax.rsqrt(jnp.maximum(cum_var, 0.0) + eps)     # (1, Tt)

        # Hot (C, Tt) path in the input dtype: subtract + two multiplies + add.
        cm = cum_mean.astype(x.dtype)
        istd = inv_std.astype(x.dtype)
        out = (x - cm) * istd                            # row-broadcast over channels
        out = out * gain_ref[...] + bias_ref[...]        # (C, 1) per-channel affine
        o_ref[0] = out.astype(o_ref.dtype)

    return cln_kernel


def cln_forward(x, gain, bias, eps=1e-8, max_tile_t=1024):
    """x: (B, C, T); gain/bias: (1, C, 1). Returns (B, C, T)."""
    B, C, T = x.shape
    itemsize = jnp.dtype(x.dtype).itemsize

    # Lane-aligned time tile; keep the double-buffered in+out blocks within a
    # budget that fits all generations' scoped VMEM once we raise the limit.
    tile_t = _round_up(min(max_tile_t, _round_up(T, 128)), 128)
    VMEM_TILE_BUDGET = 24 << 20
    while tile_t > 128 and 4 * C * tile_t * itemsize > VMEM_TILE_BUDGET:
        tile_t = max(128, _round_up(tile_t // 2, 128))

    # Pad T to a multiple of the tile (zero padding keeps the running stats
    # exact; padded outputs are sliced off).
    T_pad = _round_up(T, tile_t)
    x_in = jnp.pad(x, ((0, 0), (0, 0), (0, T_pad - T))) if T_pad != T else x
    n_t = T_pad // tile_t

    # Per-channel affine in the input dtype (matches `.type(x.type())`).
    gain2 = gain.reshape(C, 1).astype(x.dtype)
    bias2 = bias.reshape(C, 1).astype(x.dtype)

    # Precomputed 1 / entry_cnt, built once outside the kernel.
    inv_cnt = (1.0 / (jnp.arange(1, T_pad + 1, dtype=jnp.float32)
                      * jnp.float32(C))).reshape(1, T_pad)

    # VMEM limit: 2x-in + 2x-out double buffers + headroom, capped at 64 MiB
    # (v7x physical is 64 MiB per TensorCore).
    block_bytes = C * tile_t * itemsize
    vmem_limit = int(min(64 << 20, max(6 * block_bytes + (2 << 20), 16 << 20)))

    out = pl.pallas_call(
        _make_cln_kernel(float(eps)),
        out_shape=jax.ShapeDtypeStruct((B, C, T_pad), x.dtype),
        grid=(B, n_t),
        in_specs=[
            pl.BlockSpec((1, C, tile_t), lambda b, t: (b, 0, t)),
            pl.BlockSpec((1, tile_t), lambda b, t: (0, t)),
            pl.BlockSpec((C, 1), lambda b, t: (0, 0)),
            pl.BlockSpec((C, 1), lambda b, t: (0, 0)),
        ],
        # Lane-dense output tile (last dim = tile_t, a 128-multiple) — do not shrink.
        out_specs=pl.BlockSpec((1, C, tile_t), lambda b, t: (b, 0, t)),
        scratch_shapes=[
            pltpu.VMEM((2, 1), jnp.float32),   # running [cum_sum; cum_pow_sum] carry
        ],
        compiler_params=pltpu.CompilerParams(
            dimension_semantics=("parallel", "arbitrary"),  # T must stay 'arbitrary' (carry)
            vmem_limit_bytes=vmem_limit),
    )(x_in, inv_cnt, gain2, bias2)

    if T_pad != T:
        out = out[:, :, :T]
    return out


def cln_reference(x, gain, bias, eps=1e-8):
    """Pure-JAX reference mirroring the PyTorch forward()."""
    B, C, T = x.shape
    step_sum = x.sum(axis=1)                       # (B, T)
    step_pow_sum = (x ** 2).sum(axis=1)            # (B, T)
    cum_sum = jnp.cumsum(step_sum, axis=1)
    cum_pow_sum = jnp.cumsum(step_pow_sum, axis=1)
    entry_cnt = jnp.arange(C, C * (T + 1), C, dtype=x.dtype)[None, :]
    cum_mean = cum_sum / entry_cnt
    cum_var = (cum_pow_sum - 2 * cum_mean * cum_sum) / entry_cnt + cum_mean ** 2
    cum_std = jnp.sqrt(cum_var + eps)
    xn = (x - cum_mean[:, None, :]) / cum_std[:, None, :]
    return xn * gain + bias


if __name__ == "__main__":
    # Small shapes consistent with the module's (B, C, T) forward.
    B, C, T = 2, 4, 16
    key = jax.random.PRNGKey(0)
    x = jax.random.normal(key, (B, C, T), dtype=jnp.float32)
    gain = jnp.ones((1, C, 1), dtype=jnp.float32)   # matches th.ones(1, C, 1)
    bias = jnp.zeros((1, C, 1), dtype=jnp.float32)  # matches th.zeros(1, C, 1)

    out = jax.block_until_ready(cln_forward(x, gain, bias))
    ref = cln_reference(x, gain, bias)
    assert out.shape == (B, C, T)
    assert jnp.allclose(out, ref, atol=1e-5, rtol=1e-5), "mismatch vs reference (single tile)"

    # Multiple time tiles + padding + carry across tiles.
    B2, C2, T2 = 2, 8, 300
    x2 = jax.random.normal(jax.random.PRNGKey(0), (B2, C2, T2), dtype=jnp.float32)
    g2 = 0.5 + jax.random.uniform(jax.random.PRNGKey(1), (1, C2, 1), dtype=jnp.float32)
    b2 = 0.1 * jax.random.normal(jax.random.PRNGKey(2), (1, C2, 1), dtype=jnp.float32)
    out2 = jax.block_until_ready(cln_forward(x2, g2, b2, max_tile_t=128))
    ref2 = cln_reference(x2, g2, b2)
    assert out2.shape == (B2, C2, T2)
    assert jnp.allclose(out2, ref2, atol=1e-4, rtol=1e-4), "mismatch vs reference (multi tile)"

    # bf16 input: hot path stays in bf16 (stats in f32); loose tolerance vs f32 ref.
    x3 = x2.astype(jnp.bfloat16)
    out3 = jax.block_until_ready(cln_forward(x3, g2, b2, max_tile_t=256))
    ref3 = cln_reference(x3.astype(jnp.float32), g2, b2)
    assert out3.shape == (B2, C2, T2)
    assert jnp.allclose(out3.astype(jnp.float32), ref3, atol=5e-2, rtol=5e-2), \
        "mismatch vs reference (bf16)"

    print("KERNEL_OK")
</pallas_src>

<mosaic_0001>
module attributes {stable_mosaic.version = 11 : i64} {
  func.func @cln_kernel(%arg0: i32, %arg1: i32, %arg2: memref<1x4x128xf32, #tpu.memory_space<vmem>>, %arg3: memref<1x128xf32, #tpu.memory_space<vmem>>, %arg4: memref<4x1xf32, #tpu.memory_space<vmem>>, %arg5: memref<4x1xf32, #tpu.memory_space<vmem>>, %arg6: memref<1x4x128xf32, #tpu.memory_space<vmem>>, %arg7: memref<2x1xf32, #tpu.memory_space<vmem>>) attributes {dimension_semantics = [#tpu.dimension_semantics<parallel>, #tpu.dimension_semantics<arbitrary>], iteration_bounds = array<i64: 2, 1>, scalar_prefetch = 0 : i64, scratch_operands = 1 : i64, tpu.core_type = #tpu.core_type<tc>, window_params = [{transform_indices = @transform_0, window_bounds = array<i64: 1, 4, 128>}, {transform_indices = @transform_1, window_bounds = array<i64: 1, 128>}, {pipeline_mode = #tpu.pipeline_mode<synchronous>, transform_indices = @transform_2, window_bounds = array<i64: 4, 1>}, {pipeline_mode = #tpu.pipeline_mode<synchronous>, transform_indices = @transform_3, window_bounds = array<i64: 4, 1>}, {transform_indices = @transform_4, window_bounds = array<i64: 1, 4, 128>}]} {
    %c0_i32 = arith.constant 0 : i32
    %0 = arith.cmpi eq, %arg1, %c0_i32 : i32
    %1 = arith.extui %0 : i1 to i32
    %c0_i32_0 = arith.constant 0 : i32
    %2 = arith.cmpi ne, %1, %c0_i32_0 : i32
    scf.if %2 {
      %cst_34 = arith.constant 0.000000e+00 : f32
      %88 = vector.broadcast %cst_34 : f32 to vector<2x1xf32>
      %c0_35 = arith.constant 0 : index
      %c0_36 = arith.constant 0 : index
      %89 = vector.load %arg7[%c0_35, %c0_36] : memref<2x1xf32, #tpu.memory_space<vmem>>, vector<2x1xf32>
      tpu.vector_store %arg7[%c0_35, %c0_36], %88 {strides = array<i32>} : memref<2x1xf32, #tpu.memory_space<vmem>>, vector<2x1xf32>,
    } else {
    }
    %c0 = arith.constant 0 : index
    %c0_1 = arith.constant 0 : index
    %c0_2 = arith.constant 0 : index
    %3 = vector.load %arg2[%c0, %c0_1, %c0_2] : memref<1x4x128xf32, #tpu.memory_space<vmem>>, vector<1x4x128xf32>
    %4 = vector.shape_cast %3 : vector<1x4x128xf32> to vector<4x128xf32>
    %cst = arith.constant dense<0.000000e+00> : vector<128xf32>
    %5 = vector.multi_reduction <add>, %4, %cst [0] : vector<4x128xf32> to vector<128xf32>
    %6 = vector.shape_cast %5 : vector<128xf32> to vector<1x128xf32>
    %7 = arith.mulf %4, %4 : vector<4x128xf32>
    %cst_3 = arith.constant dense<0.000000e+00> : vector<128xf32>
    %8 = vector.multi_reduction <add>, %7, %cst_3 [0] : vector<4x128xf32> to vector<128xf32>
    %9 = vector.shape_cast %8 : vector<128xf32> to vector<1x128xf32>
    %10 = tpu.concatenate %6, %9 in 0 : vector<1x128xf32>, vector<1x128xf32> -> vector<2x128xf32>
    %11 = tpu.iota {dimensions = array<i32: 1>} : vector<2x128xi32>
    %c1_i32 = arith.constant 1 : i32
    %12 = tpu.dynamic_rotate %10 by %c1_i32 dim 1 : vector<2x128xf32>, i32 -> vector<2x128xf32>
    %c1_i32_4 = arith.constant 1 : i32
    %13 = vector.broadcast %c1_i32_4 : i32 to vector<2x128xi32>
    %14 = arith.cmpi sge, %11, %13 : vector<2x128xi32>
    %cst_5 = arith.constant 0.000000e+00 : f32
    %15 = vector.broadcast %cst_5 : f32 to vector<2x128xf32>
    %16 = arith.select %14, %12, %15 : vector<2x128xi1>, vector<2x128xf32>
    %17 = arith.addf %10, %16 : vector<2x128xf32>
    %c2_i32 = arith.constant 2 : i32
    %18 = tpu.dynamic_rotate %17 by %c2_i32 dim 1 : vector<2x128xf32>, i32 -> vector<2x128xf32>
    %c2_i32_6 = arith.constant 2 : i32
    %19 = vector.broadcast %c2_i32_6 : i32 to vector<2x128xi32>
    %20 = arith.cmpi sge, %11, %19 : vector<2x128xi32>
    %cst_7 = arith.constant 0.000000e+00 : f32
    %21 = vector.broadcast %cst_7 : f32 to vector<2x128xf32>
    %22 = arith.select %20, %18, %21 : vector<2x128xi1>, vector<2x128xf32>
    %23 = arith.addf %17, %22 : vector<2x128xf32>
    %c4_i32 = arith.constant 4 : i32
    %24 = tpu.dynamic_rotate %23 by %c4_i32 dim 1 : vector<2x128xf32>, i32 -> vector<2x128xf32>
    %c4_i32_8 = arith.constant 4 : i32
    %25 = vector.broadcast %c4_i32_8 : i32 to vector<2x128xi32>
    %26 = arith.cmpi sge, %11, %25 : vector<2x128xi32>
    %cst_9 = arith.constant 0.000000e+00 : f32
    %27 = vector.broadcast %cst_9 : f32 to vector<2x128xf32>
    %28 = arith.select %26, %24, %27 : vector<2x128xi1>, vector<2x128xf32>
    %29 = arith.addf %23, %28 : vector<2x128xf32>
    %c8_i32 = arith.constant 8 : i32
    %30 = tpu.dynamic_rotate %29 by %c8_i32 dim 1 : vector<2x128xf32>, i32 -> vector<2x128xf32>
    %c8_i32_10 = arith.constant 8 : i32
    %31 = vector.broadcast %c8_i32_10 : i32 to vector<2x128xi32>
    %32 = arith.cmpi sge, %11, %31 : vector<2x128xi32>
    %cst_11 = arith.constant 0.000000e+00 : f32
    %33 = vector.broadcast %cst_11 : f32 to vector<2x128xf32>
    %34 = arith.select %32, %30, %33 : vector<2x128xi1>, vector<2x128xf32>
    %35 = arith.addf %29, %34 : vector<2x128xf32>
    %c16_i32 = arith.constant 16 : i32
    %36 = tpu.dynamic_rotate %35 by %c16_i32 dim 1 : vector<2x128xf32>, i32 -> vector<2x128xf32>
    %c16_i32_12 = arith.constant 16 : i32
    %37 = vector.broadcast %c16_i32_12 : i32 to vector<2x128xi32>
    %38 = arith.cmpi sge, %11, %37 : vector<2x128xi32>
    %cst_13 = arith.constant 0.000000e+00 : f32
    %39 = vector.broadcast %cst_13 : f32 to vector<2x128xf32>
    %40 = arith.select %38, %36, %39 : vector<2x128xi1>, vector<2x128xf32>
    %41 = arith.addf %35, %40 : vector<2x128xf32>
    %c32_i32 = arith.constant 32 : i32
    %42 = tpu.dynamic_rotate %41 by %c32_i32 dim 1 : vector<2x128xf32>, i32 -> vector<2x128xf32>
    %c32_i32_14 = arith.constant 32 : i32
    %43 = vector.broadcast %c32_i32_14 : i32 to vector<2x128xi32>
    %44 = arith.cmpi sge, %11, %43 : vector<2x128xi32>
    %cst_15 = arith.constant 0.000000e+00 : f32
    %45 = vector.broadcast %cst_15 : f32 to vector<2x128xf32>
    %46 = arith.select %44, %42, %45 : vector<2x128xi1>, vector<2x128xf32>
    %47 = arith.addf %41, %46 : vector<2x128xf32>
    %c64_i32 = arith.constant 64 : i32
    %48 = tpu.dynamic_rotate %47 by %c64_i32 dim 1 : vector<2x128xf32>, i32 -> vector<2x128xf32>
    %c64_i32_16 = arith.constant 64 : i32
    %49 = vector.broadcast %c64_i32_16 : i32 to vector<2x128xi32>
    %50 = arith.cmpi sge, %11, %49 : vector<2x128xi32>
    %cst_17 = arith.constant 0.000000e+00 : f32
    %51 = vector.broadcast %cst_17 : f32 to vector<2x128xf32>
    %52 = arith.select %50, %48, %51 : vector<2x128xi1>, vector<2x128xf32>
    %53 = arith.addf %47, %52 : vector<2x128xf32>
    %c0_18 = arith.constant 0 : index
    %c0_19 = arith.constant 0 : index
    %54 = vector.load %arg7[%c0_18, %c0_19] : memref<2x1xf32, #tpu.memory_space<vmem>>, vector<2x1xf32>
    %55 = vector.broadcast %54 : vector<2x1xf32> to vector<2x128xf32>
    %56 = arith.addf %53, %55 : vector<2x128xf32>
    %57 = vector.extract_strided_slice %56 {offsets = [0, 127], sizes = [2, 1], strides = [1, 1]} : vector<2x128xf32> to vector<2x1xf32>
    %c0_20 = arith.constant 0 : index
    %c0_21 = arith.constant 0 : index
    %58 = vector.load %arg7[%c0_20, %c0_21] : memref<2x1xf32, #tpu.memory_space<vmem>>, vector<2x1xf32>
    tpu.vector_store %arg7[%c0_20, %c0_21], %57 {strides = array<i32>} : memref<2x1xf32, #tpu.memory_space<vmem>>, vector<2x1xf32>,
    %59 = vector.extract_strided_slice %56 {offsets = [0, 0], sizes = [1, 128], strides = [1, 1]} : vector<2x128xf32> to vector<1x128xf32>
    %60 = vector.extract_strided_slice %56 {offsets = [1, 0], sizes = [1, 128], strides = [1, 1]} : vector<2x128xf32> to vector<1x128xf32>
    %c0_22 = arith.constant 0 : index
    %c0_23 = arith.constant 0 : index
    %61 = vector.load %arg3[%c0_22, %c0_23] : memref<1x128xf32, #tpu.memory_space<vmem>>, vector<1x128xf32>
    %62 = arith.mulf %59, %61 : vector<1x128xf32>
    %cst_24 = arith.constant 2.000000e+00 : f32
    %63 = vector.broadcast %cst_24 : f32 to vector<1x128xf32>
    %64 = arith.mulf %63, %62 : vector<1x128xf32>
    %65 = arith.mulf %64, %59 : vector<1x128xf32>
    %66 = arith.subf %60, %65 : vector<1x128xf32>
    %67 = arith.mulf %66, %61 : vector<1x128xf32>
    %68 = arith.mulf %62, %62 : vector<1x128xf32>
    %69 = arith.addf %67, %68 : vector<1x128xf32>
    %cst_25 = arith.constant 0.000000e+00 : f32
    %70 = vector.broadcast %cst_25 : f32 to vector<1x128xf32>
    %71 = arith.maximumf %69, %70 : vector<1x128xf32>
    %cst_26 = arith.constant 9.99999993E-9 : f32
    %72 = vector.broadcast %cst_26 : f32 to vector<1x128xf32>
    %73 = arith.addf %71, %72 : vector<1x128xf32>
    %74 = math.rsqrt %73 : vector<1x128xf32>
    %75 = vector.broadcast %62 : vector<1x128xf32> to vector<4x128xf32>
    %76 = arith.subf %4, %75 : vector<4x128xf32>
    %77 = vector.broadcast %74 : vector<1x128xf32> to vector<4x128xf32>
    %78 = arith.mulf %76, %77 : vector<4x128xf32>
    %c0_27 = arith.constant 0 : index
    %c0_28 = arith.constant 0 : index
    %79 = vector.load %arg4[%c0_27, %c0_28] : memref<4x1xf32, #tpu.memory_space<vmem>>, vector<4x1xf32>
    %80 = vector.broadcast %79 : vector<4x1xf32> to vector<4x128xf32>
    %81 = arith.mulf %78, %80 : vector<4x128xf32>
    %c0_29 = arith.constant 0 : index
    %c0_30 = arith.constant 0 : index
    %82 = vector.load %arg5[%c0_29, %c0_30] : memref<4x1xf32, #tpu.memory_space<vmem>>, vector<4x1xf32>
    %83 = vector.broadcast %82 : vector<4x1xf32> to vector<4x128xf32>
    %84 = arith.addf %81, %83 : vector<4x128xf32>
    %c0_31 = arith.constant 0 : index
    %c0_32 = arith.constant 0 : index
    %c0_33 = arith.constant 0 : index
    %85 = vector.load %arg6[%c0_31, %c0_32, %c0_33] : memref<1x4x128xf32, #tpu.memory_space<vmem>>, vector<1x4x128xf32>
    %86 = vector.shape_cast %85 : vector<1x4x128xf32> to vector<4x128xf32>
    %87 = vector.shape_cast %84 : vector<4x128xf32> to vector<1x4x128xf32>
    tpu.vector_store %arg6[%c0_31, %c0_32, %c0_33], %87 {strides = array<i32>} : memref<1x4x128xf32, #tpu.memory_space<vmem>>, vector<1x4x128xf32>,
    return
  }
  func.func @transform_0(%arg0: i32, %arg1: i32) -> (i32, i32, i32) {
    %c0_i32 = arith.constant 0 : i32
    %c0_i32_0 = arith.constant 0 : i32
    return %arg0, %c0_i32, %arg1 : i32, i32, i32
  }
  func.func @transform_1(%arg0: i32, %arg1: i32) -> (i32, i32) {
    %c0_i32 = arith.constant 0 : i32
    %c0_i32_0 = arith.constant 0 : i32
    return %c0_i32, %arg1 : i32, i32
  }
  func.func @transform_2(%arg0: i32, %arg1: i32) -> (i32, i32) {
    %c0_i32 = arith.constant 0 : i32
    %c0_i32_0 = arith.constant 0 : i32
    %c0_i32_1 = arith.constant 0 : i32
    return %c0_i32, %c0_i32_0 : i32, i32
  }
  func.func @transform_3(%arg0: i32, %arg1: i32) -> (i32, i32) {
    %c0_i32 = arith.constant 0 : i32
    %c0_i32_0 = arith.constant 0 : i32
    %c0_i32_1 = arith.constant 0 : i32
    return %c0_i32, %c0_i32_0 : i32, i32
  }
  func.func @transform_4(%arg0: i32, %arg1: i32) -> (i32, i32, i32) {
    %c0_i32 = arith.constant 0 : i32
    %c0_i32_0 = arith.constant 0 : i32
    return %arg0, %c0_i32, %arg1 : i32, i32, i32
  }
}

</mosaic_0001>

<llo_original>
// kernel: tpu_custom_call.1
$region0: #{tpu_custom_call.1}
  #allocation0 [shape = 'u32[]', space=smem, size = 0x4, offset = 0x4, fixed_abs, tag = 'smem constant byte address 0x4 - core index']
  #allocation1 [shape = 'u32[144,128]{1,0:T(1,128)}', space=vmem, size = 0x12000, scoped, tag = 'internal scratch']
  #allocation2 [shape = 'f32[2,1]{1,0:T(2,128)}', space=vmem, size = 0x400, scoped, tag = 'scratch operand']
  %s0 = inlined_call_operand.vmem [shape: f32[2,4,128], index: 0, kind: input, shape index: {}]
  %s1 = inlined_call_operand.vmem [shape: f32[1,128], index: 1, kind: input, shape index: {}]
  %s2 = inlined_call_operand.vmem [shape: f32[4,1], index: 2, kind: input, shape index: {}]
  %s3 = inlined_call_operand.vmem [shape: f32[4,1], index: 3, kind: input, shape index: {}]
  %s4 = inlined_call_operand.hbm [shape: f32[2,4,128], index: 4, kind: output, shape index: {}]
  %s5 = sld [smem:[#allocation0]]
  $region53: #{tpu_custom_call.1} parent=0
    _
  %s7 = ssub.s32 1, %s5
  %s8 = scalar_select 0, %s7, %s5
  $region1: #{tpu_custom_call.1} parent=0
    #allocation3 [shape = 'u8[4096]{0}', space=vmem, size = 0x1000, scoped, tag = 'output window, operand 0']
    #allocation4 [shape = 's32[2]{0}', space=sflag, size = 0x8, scoped, tag = 'scoped memory for tpu_custom_call.1']
    %9 = vsyncpa [#allocation4], 0
    %s10 = scalar_lea.sflag [#allocation4], 1
    %11 = vsyncpa %s10, 0
    loop: start=0, step=1, limit=4
    $region2: #{tpu_custom_call.1} parent=1 // loop_pre_header
      _
    $region3: #{tpu_custom_call.1} parent=1 // loop_header
      %s13 = sphi 0, %s17
      %p14 = scmp.ge.s32.totalorder %s13, 4
      %s20 = sphi 0, %s32
      %s21 = sphi 0, %s28
      %s22 = sphi 0, %s20
      %s23 = sphi 0, %s21
      %s24 = sphi 0, %s22
      %s25 = sphi 0, %s23
      %s37 = sphi 0, %s39
      %s40 = sphi 0, %s37
      %s41 = sphi 0, %s40
      %s57 = sphi 0, %s41
      %s63 = sphi 0, %s65
      %s66 = sphi 0, %s63
      %s67 = sphi 0, %s66
      %s83 = sphi 0, %s67
      %s87 = sphi 0, %s87
      %s89 = sphi 0, %s87
      %s90 = sphi 0, %s89
      %s104 = sphi 0, %s90
      %s108 = sphi 0, %s108
      %s110 = sphi 0, %s108
      %s111 = sphi 0, %s110
      %s125 = sphi 0, %s111
      %s133 = sphi 0, %s135
      %s136 = sphi 0, %s133
      %s137 = sphi 0, %s136
      %s153 = sphi 0, %s137
    $region4: #{tpu_custom_call.1} parent=1 // loop_header_branch
      %16 = sbr.rel (%p14) target = $region8
    $region5: #{tpu_custom_call.1} parent=1 // loop_body
      %s18 = ssub.s32 %s13, 1
      %s19 = ssub.s32 %s13, 2
      %s26 = sadd.s32 1, %s21
      %p27 = scmp.ge.s32.totalorder %s26, 1
      %s28 = scalar_select %p27, 0, %s26
      %s29 = sadd.s32 1, %s20
      %s30 = scalar_select %p27, %s29, %s20
      %p31 = scmp.ge.s32.totalorder %s30, 2
      %s32 = scalar_select %p31, 0, %s30
      %s33 = ssub.s32 %s20, %s32
      %s34 = ssub.s32 %s21, %s28
      %s35 = sor.u32 %s33, %s34
      %p36 = scmp.eq.s32.totalorder %s35, 0
      %s38 = sadd.s32 %s37, 1
      %s39 = scalar_select %p36, %s37, %s38
      %p42 = pneg %p36
      %p43 = scmp.eq.s32.totalorder %s13, 1
      %p44 = por %p42, %p43
      %p45 = scmp.ne.s32.totalorder %s37, %s40
      %p46 = scmp.eq.s32.totalorder %s13, 0
      %p47 = por %p45, %p46
      %p48 = scmp.ne.s32.totalorder %s37, %s40
      %p49 = scmp.eq.s32.totalorder %s18, 1
      %p50 = por %p48, %p49
      %p51 = scmp.ne.s32.totalorder %s40, %s41
      %p52 = scmp.eq.s32.totalorder %s18, 0
      %p53 = por %p51, %p52
      %p54 = scmp.ne.s32.totalorder %s40, %s41
      %p55 = scmp.eq.s32.totalorder %s19, 1
      %p56 = por %p54, %p55
      %p58 = scmp.ne.s32.totalorder %s41, %s57
      %p59 = scmp.eq.s32.totalorder %s19, 0
      %p60 = por %p58, %p59
      %s61 = ssub.s32 %s21, %s28
      %p62 = scmp.eq.s32.totalorder %s61, 0
      %s64 = sadd.s32 %s63, 1
      %s65 = scalar_select %p62, %s63, %s64
      %p68 = pneg %p62
      %p69 = scmp.eq.s32.totalorder %s13, 1
      %p70 = por %p68, %p69
      %p71 = scmp.ne.s32.totalorder %s63, %s66
      %p72 = scmp.eq.s32.totalorder %s13, 0
      %p73 = por %p71, %p72
      %p74 = scmp.ne.s32.totalorder %s63, %s66
      %p75 = scmp.eq.s32.totalorder %s18, 1
      %p76 = por %p74, %p75
      %p77 = scmp.ne.s32.totalorder %s66, %s67
      %p78 = scmp.eq.s32.totalorder %s18, 0
      %p79 = por %p77, %p78
      %p80 = scmp.ne.s32.totalorder %s66, %s67
      %p81 = scmp.eq.s32.totalorder %s19, 1
      %p82 = por %p80, %p81
      %p84 = scmp.ne.s32.totalorder %s67, %s83
      %p85 = scmp.eq.s32.totalorder %s19, 0
      %p86 = por %p84, %p85
      %s88 = sadd.s32 %s87, 1
      %p91 = scmp.eq.s32.totalorder %s13, 1
      %p92 = scmp.ne.s32.totalorder %s87, %s89
      %p93 = scmp.eq.s32.totalorder %s13, 0
      %p94 = por %p92, %p93
      %p95 = scmp.ne.s32.totalorder %s87, %s89
      %p96 = scmp.eq.s32.totalorder %s18, 1
      %p97 = por %p95, %p96
      %p98 = scmp.ne.s32.totalorder %s89, %s90
      %p99 = scmp.eq.s32.totalorder %s18, 0
      %p100 = por %p98, %p99
      %p101 = scmp.ne.s32.totalorder %s89, %s90
      %p102 = scmp.eq.s32.totalorder %s19, 1
      %p103 = por %p101, %p102
      %p105 = scmp.ne.s32.totalorder %s90, %s104
      %p106 = scmp.eq.s32.totalorder %s19, 0
      %p107 = por %p105, %p106
      %s109 = sadd.s32 %s108, 1
      %p112 = scmp.eq.s32.totalorder %s13, 1
      %p113 = scmp.ne.s32.totalorder %s108, %s110
      %p114 = scmp.eq.s32.totalorder %s13, 0
      %p115 = por %p113, %p114
      %p116 = scmp.ne.s32.totalorder %s108, %s110
      %p117 = scmp.eq.s32.totalorder %s18, 1
      %p118 = por %p116, %p117
      %p119 = scmp.ne.s32.totalorder %s110, %s111
      %p120 = scmp.eq.s32.totalorder %s18, 0
      %p121 = por %p119, %p120
      %p122 = scmp.ne.s32.totalorder %s110, %s111
      %p123 = scmp.eq.s32.totalorder %s19, 1
      %p124 = por %p122, %p123
      %p126 = scmp.ne.s32.totalorder %s111, %s125
      %p127 = scmp.eq.s32.totalorder %s19, 0
      %p128 = por %p126, %p127
      %s129 = ssub.s32 %s20, %s32
      %s130 = ssub.s32 %s21, %s28
      %s131 = sor.u32 %s129, %s130
      %p132 = scmp.eq.s32.totalorder %s131, 0
      %s134 = sadd.s32 %s133, 1
      %s135 = scalar_select %p132, %s133, %s134
      %p138 = pneg %p132
      %p139 = scmp.eq.s32.totalorder %s13, 1
      %p140 = por %p138, %p139
      %p141 = scmp.ne.s32.totalorder %s133, %s136
      %p142 = scmp.eq.s32.totalorder %s13, 0
      %p143 = por %p141, %p142
      %p144 = scmp.ne.s32.totalorder %s133, %s136
      %p145 = scmp.eq.s32.totalorder %s18, 1
      %p146 = por %p144, %p145
      %p147 = scmp.ne.s32.totalorder %s136, %s137
      %p148 = scmp.eq.s32.totalorder %s18, 0
      %p149 = por %p147, %p148
      %p150 = scmp.ne.s32.totalorder %s136, %s137
      %p151 = scmp.eq.s32.totalorder %s19, 1
      %p152 = por %p150, %p151
      %p154 = scmp.ne.s32.totalorder %s137, %s153
      %p155 = scmp.eq.s32.totalorder %s19, 0
      %p156 = por %p154, %p155
      %p157 = scmp.le.s32.totalorder 1, %s13
      %p158 = scmp.lt.s32.totalorder %s13, 3
      %p159 = pnand %p157, %p158
      %p160 = pneg %p159
      // Predicated region
      $region9: #{tpu_custom_call.1} parent=5 // pred_check
        _
      $region10: #{tpu_custom_call.1} parent=5 // pred_check_branch
        %162 = sbr.rel (%p159) target = $region12
      $region11: #{tpu_custom_call.1} parent=5 // pred_region
        %s163 = ssub.s32 %s13, 1
        // Predicated region
        $region13: #{tpu_custom_call.1} parent=11 // pred_check
          %p164 = pneg %p79
        $region14: #{tpu_custom_call.1} parent=11 // pred_check_branch
          %166 = sbr.rel (%p164) target = $region16
        $region15: #{tpu_custom_call.1} parent=11 // pred_region
          %p167 = scmp.lt.s32.totalorder %s23, 0
          %s168 = scalar_select %p167, %s23, 0
          %s169 = scalar_lea.vmem %s1, %s168
        $region16: #{tpu_custom_call.1} parent=11 // pred_fallthru
          _
        // Predicated region
        $region17: #{tpu_custom_call.1} parent=11 // pred_check
          %p170 = pneg %p100
        $region18: #{tpu_custom_call.1} parent=11 // pred_check_branch
          %172 = sbr.rel (%p170) target = $region20
        $region19: #{tpu_custom_call.1} parent=11 // pred_region
          _
        $region20: #{tpu_custom_call.1} parent=11 // pred_fallthru
          _
        // Predicated region
        $region21: #{tpu_custom_call.1} parent=11 // pred_check
          %p173 = pneg %p121
        $region22: #{tpu_custom_call.1} parent=11 // pred_check_branch
          %175 = sbr.rel (%p173) target = $region24
        $region23: #{tpu_custom_call.1} parent=11 // pred_region
          _
        $region24: #{tpu_custom_call.1} parent=11 // pred_fallthru
          _
      $region12: #{tpu_custom_call.1} parent=5 // pred_fallthru
        _
      %p176 = scmp.lt.s32.totalorder %s13, 2
      // Predicated region
      $region25: #{tpu_custom_call.1} parent=5 // pred_check
        %p177 = pneg %p176
      $region26: #{tpu_custom_call.1} parent=5 // pred_check_branch
        %179 = sbr.rel (%p177) target = $region28
      $region27: #{tpu_custom_call.1} parent=5 // pred_region
        // Predicated region
        $region29: #{tpu_custom_call.1} parent=27 // pred_check
          %p180 = pneg %p47
        $region30: #{tpu_custom_call.1} parent=27 // pred_check_branch
          %182 = sbr.rel (%p180) target = $region32
        $region31: #{tpu_custom_call.1} parent=27 // pred_region
          %p183 = scmp.lt.s32.totalorder %s20, 1
          %s184 = scalar_select %p183, %s20, 1
          %p185 = scmp.lt.s32.totalorder %s21, 0
          %s186 = scalar_select %p185, %s21, 0
          %s187 = sadd.s32 %s186, %s184
          %s188 = smul.addr %s187, 4
          %s189 = scalar_lea.vmem %s0, %s188
        $region32: #{tpu_custom_call.1} parent=27 // pred_fallthru
          _
      $region28: #{tpu_custom_call.1} parent=5 // pred_fallthru
        _
      %p190 = scmp.le.s32.totalorder 1, %s13
      %p191 = scmp.lt.s32.totalorder %s13, 3
      %p192 = pnand %p190, %p191
      %p193 = pneg %p192
      // Predicated region
      $region33: #{tpu_custom_call.1} parent=5 // pred_check
        _
      $region34: #{tpu_custom_call.1} parent=5 // pred_check_branch
        %195 = sbr.rel (%p192) target = $region36
      $region35: #{tpu_custom_call.1} parent=5 // pred_region
        %s196 = ssub.s32 %s13, 1
        %p197 = scmp.lt.s32.totalorder %s22, 1
        %s198 = scalar_select %p197, %s22, 1
        %p199 = scmp.lt.s32.totalorder %s23, 0
        %s200 = scalar_select %p199, %s23, 0
        %s201 = sadd.s32 %s200, %s198
        %s202 = smul.addr %s201, 4
        %s203 = scalar_lea.vmem %s0, %s202
        %p204 = pneg %p53
        %p205 = pneg %p50
        %p206 = scmp.lt.s32.totalorder %s23, 0
        %s207 = scalar_select %p206, %s23, 0
        %s208 = scalar_lea.vmem %s1, %s207
        %p209 = pneg %p79
        %p210 = pneg %p76
        %p211 = pneg %p100
        %p212 = pneg %p97
        %p213 = pneg %p121
        %p214 = pneg %p118
        %p215 = pneg %p149
        %p216 = pneg %p146
        %s217 = sand.u32 %s136, 1
        %s218 = scalar_lea.sflag [#allocation4], %s217
        %s219 = sand.u32 %s136, 1
        %s220 = smul.addr %s219, 4
        %s221 = scalar_lea.vmem [#allocation3], %s220
        %p222 = scmp.lt.s32.totalorder %s22, 1
        %s223 = scalar_select %p222, %s22, 1
        %p224 = scmp.lt.s32.totalorder %s23, 0
        %s225 = scalar_select %p224, %s23, 0
        %s226 = sadd.s32 %s225, %s223
        %s227 = smul.addr %s226, 4
        %s228 = scalar_lea.vmem %s0, %s227
        %p229 = scmp.lt.s32.totalorder %s23, 0
        %s230 = scalar_select %p229, %s23, 0
        %s231 = scalar_lea.vmem %s1, %s230
        %p232 = scmp.eq.s32.totalorder %s23, 0
        // Predicated region
        $region37: #{tpu_custom_call.1} parent=35 // pred_check
          %p233 = pneg %p232
        $region38: #{tpu_custom_call.1} parent=35 // pred_check_branch
          %235 = sbr.rel (%p233) target = $region40
        $region39: #{tpu_custom_call.1} parent=35 // pred_region
          %vm236 = vcmask 1024
          %237 = vst.msk [vmem:[#allocation2] sm:$0x3] %vm236, 0.0
        $region40: #{tpu_custom_call.1} parent=35 // pred_fallthru
          _
        %v238 = vld [vmem:[%s228] sm:$0xf]
        %vm239 = vcmask 1043456
        %v240 = vsel %vm239, %v238, 0.0
        %v241 = vrot.slane %v240, 4
        %v242 = vadd.f32 %v240, %v241
        %v243 = vrot.slane %v242, 2
        %v244 = vadd.f32 %v242, %v243
        %v245 = vrot.slane %v244, 1
        %v246 = vadd.f32 %v244, %v245
        %v247 = vmul.f32 %v238, %v238
        %v248 = vsel %vm239, %v247, 0.0
        %v249 = vrot.slane %v248, 4
        %v250 = vadd.f32 %v248, %v249
        %v251 = vrot.slane %v250, 2
        %v252 = vadd.f32 %v250, %v251
        %v253 = vrot.slane %v252, 1
        %v254 = vadd.f32 %v252, %v253
        %vm255 = vcmask 1040384
        %v256 = vsel %vm255, %v246, %v254
        %v257 = vlaneseq
        %v258 = vand.u32 %v257, 127
        %259 = vrot.lane.b32.xlu0 %v256, 1
        %v260 = vpop.permute.xlu0 %259
        %vm261 = vcmp.ge.s32.totalorder %v258, 1
        %v262 = vsel %vm261, %v260, 0.0
        %v263 = vadd.f32 %v256, %v262
        %264 = vrot.lane.b32.xlu0 %v263, 2
        %v265 = vpop.permute.xlu0 %264
        %vm266 = vcmp.ge.s32.totalorder %v258, 2
        %v267 = vsel %vm266, %v265, 0.0
        %v268 = vadd.f32 %v263, %v267
        %269 = vrot.lane.b32.xlu0 %v268, 4
        %v270 = vpop.permute.xlu0 %269
        %vm271 = vcmp.ge.s32.totalorder %v258, 4
        %v272 = vsel %vm271, %v270, 0.0
        %v273 = vadd.f32 %v268, %v272
        %274 = vrot.lane.b32.xlu0 %v273, 8
        %v275 = vpop.permute.xlu0 %274
        %vm276 = vcmp.ge.s32.totalorder %v258, 8
        %v277 = vsel %vm276, %v275, 0.0
        %v278 = vadd.f32 %v273, %v277
        %279 = vrot.lane.b32.xlu0 %v278, 16
        %v280 = vpop.permute.xlu0 %279
        %vm281 = vcmp.ge.s32.totalorder %v258, 16
        %v282 = vsel %vm281, %v280, 0.0
        %v283 = vadd.f32 %v278, %v282
        %284 = vrot.lane.b32.xlu0 %v283, 32
        %v285 = vpop.permute.xlu0 %284
        %vm286 = vcmp.ge.s32.totalorder %v258, 32
        %v287 = vsel %vm286, %v285, 0.0
        %v288 = vadd.f32 %v283, %v287
        %289 = vrot.lane.b32.xlu0 %v288, 64
        %v290 = vpop.permute.xlu0 %289
        %vm291 = vcmp.ge.s32.totalorder %v258, 64
        %v292 = vsel %vm291, %v290, 0.0
        %v293 = vadd.f32 %v288, %v292
        %v294 = vld [vmem:[#allocation2] sm:$0x3]
        %296 = vset.pattern.permute.xlu0 0
        %297 = vperm.xlu0 %296, %v294
        %v298 = vpop.permute.xlu0 %297
        %v300 = vadd.f32 %v293, %v298
        %302 = vrot.lane.b32.xlu0 %v300, 1
        %v303 = vpop.permute.xlu0 %302
        %vm305 = vcmask 1024
        %306 = vst.msk [vmem:[#allocation2] sm:$0x3] %vm305, %v303
        %v307 = vld [vmem:[%s231] sm:$0x1]
        %v308 = vmul.f32 %v300, %v307
        %v309 = vmul.f32 %v308, 2.0
        %v310 = vmul.f32 %v309, %v300
        %v312 = vrot.slane %v310, 7
        %v314 = vsub.f32 %v300, %v312
        %v316 = vlaneseq
        %v317 = vshrl.u32 %v316, 7
        %v318 = vsub.s32 0, %v317
        %v319 = vrot.slane %v307, %v318
        %v321 = vmul.f32 %v314, %v319
        %v322 = vmul.f32 %v308, %v308
        %v324 = vrot.slane %v322, 7
        %v326 = vadd.f32 %v321, %v324
        %v327 = vmax.f32 %v326, 0.0
        %v328 = vadd.f32 %v327, 1e-08
        %v329 = vrsqrt.pop %v328
        %v330 = vlaneseq
        %v331 = vshrl.u32 %v330, 7
        %v332 = vsub.s32 0, %v331
        %v333 = vrot.slane %v308, %v332
        %v334 = vsub.f32 %v238, %v333
        %v335 = vlaneseq
        %v336 = vshrl.u32 %v335, 7
        %v337 = vsub.s32 1, %v336
        %v338 = vrot.slane %v329, %v337
        %v339 = vmul.f32 %v334, %v338
        %v340 = vld [vmem:[%s2] sm:$0xf]
        %342 = vset.pattern.permute.xlu0 0
        %343 = vperm.xlu0 %342, %v340
        %v344 = vpop.permute.xlu0 %343
        %v346 = vmul.f32 %v339, %v344
        %v347 = vld [vmem:[%s3] sm:$0xf]
        %349 = vset.pattern.permute.xlu0 0
        %350 = vperm.xlu0 %349, %v347
        %v351 = vpop.permute.xlu0 %350
        %v353 = vadd.f32 %v346, %v351
        %354 = vst [vmem:[%s221] sm:$0xf] %v353
        %s355 = sand.u32 %s136, 1
        %s356 = scalar_lea.sflag [#allocation4], %s355
        %s357 = sand.u32 %s136, 1
        %s358 = smul.addr %s357, 4
        %s359 = scalar_lea.vmem [#allocation3], %s358
        // Predicated region
        $region41: #{tpu_custom_call.1} parent=35 // pred_check
          %p360 = pneg %p146
        $region42: #{tpu_custom_call.1} parent=35 // pred_check_branch
          %362 = sbr.rel (%p360) target = $region44
        $region43: #{tpu_custom_call.1} parent=35 // pred_region
          %s364 = ssub.s32 64, 64
          %365 = vsyncadd %s356, %s364
          %s366 = sadd.s32 %s23, %s22
          %s367 = smul.addr %s366, 64
          %s368 = scalar_lea.hbm %s4, %s367
          %s370 = sshll.u32 %s359, 4
          %s371 = int_to_ptr.vmem [resolvable:$true] %s370
          %373 = dma.vmem_to_hbm [thread:$0]  %s371, 64, %s368, %s356
        $region44: #{tpu_custom_call.1} parent=35 // pred_fallthru
          _
      $region36: #{tpu_custom_call.1} parent=5 // pred_fallthru
        _
      %p374 = scmp.le.s32.totalorder 2, %s13
      // Predicated region
      $region45: #{tpu_custom_call.1} parent=5 // pred_check
        %p375 = pneg %p374
      $region46: #{tpu_custom_call.1} parent=5 // pred_check_branch
        %377 = sbr.rel (%p375) target = $region48
      $region47: #{tpu_custom_call.1} parent=5 // pred_region
        %s378 = ssub.s32 %s13, 2
        // Predicated region
        $region49: #{tpu_custom_call.1} parent=47 // pred_check
          %p379 = pneg %p152
        $region50: #{tpu_custom_call.1} parent=47 // pred_check_branch
          %381 = sbr.rel (%p379) target = $region52
        $region51: #{tpu_custom_call.1} parent=47 // pred_region
          %s382 = sand.u32 %s137, 1
          %s383 = scalar_lea.sflag [#allocation4], %s382
          %s384 = sand.u32 %s137, 1
          %s385 = smul.addr %s384, 4
          %s386 = scalar_lea.vmem [#allocation3], %s385
          %387 = dma.done %s383, 64
        $region52: #{tpu_custom_call.1} parent=47 // pred_fallthru
          _
      $region48: #{tpu_custom_call.1} parent=5 // pred_fallthru
        _
    $region6: #{tpu_custom_call.1} parent=1 // loop_footer
      %s17 = sadd.s32 1, %s13
    $region7: #{tpu_custom_call.1} parent=1 // loop_footer_branch
      %12 = sbr.rel target = $region3
    $region8: #{tpu_custom_call.1} parent=1 // loop_exit
      _
    %388 = vsyncpa [#allocation4], 1
    %s389 = scalar_lea.sflag [#allocation4], 1
    %390 = vsyncpa %s389, 1

</llo_original>
